<compile_context>
chip_gen: v7x
topology: tpu7x:2x2x1
jax: 0.10.0
libtpu: 0.0.40
codegen_flags: <defaults>
</compile_context>

<pallas_src>
import jax
import jax.numpy as jnp
from jax.experimental import pallas as pl
from jax.experimental.pallas import tpu as pltpu

_LANE = 128


def _iadb_kernel(alpha_ref, img_ref, noise_ref, out_ref):
    # alpha_ref: SMEM f32[B]          (scalar prefetch) per-batch blend factor
    # img_ref  : VMEM (C,   R, 128)   image tile for (batch b, row tile s)
    # noise_ref: VMEM (C,   R, 128)   Gaussian noise tile
    # out_ref  : VMEM (C+1, R, 128)   blend channels + alpha channel
    b = pl.program_id(0)
    a = alpha_ref[b]
    one_minus_a = 1.0 - a                      # hoisted scalar work

    c = img_ref.shape[0]
    # blend = noise*(1-alpha) + image*alpha  (2 vmul + 1 vadd per vreg)
    out_ref[0:c] = noise_ref[...] * one_minus_a + img_ref[...] * a
    # alpha channel: one dense (R, 128) plane, stored directly (no sublane-
    # crossing concatenate, no masked merge).
    out_ref[c] = jnp.full(out_ref.shape[1:], a, dtype=out_ref.dtype)


def _plan_tiling(S, C, B):
    """Pick (s_pad, rows_pad, row_tile, n_tiles) for the (rows, 128) layout.

    Keeps the double-buffered working set well under the 32 MiB scoped VMEM
    budget (valid on v5e/v6e/v7x), prefers tiles that divide the row count
    (no padding / trailing-slice passes), and aims for >= 2 grid steps so both
    v7x TensorCores and the prefetch pipeline stay busy.
    """
    rows = pl.cdiv(S, _LANE)

    # Double-buffered bytes per (128-wide) row across all streams:
    # image (C) + noise (C) + out (C+1), f32, x2 buffers each.
    bytes_per_row = _LANE * 4 * 2 * (3 * C + 1)
    budget = 24 * 1024 * 1024
    max_tile = max(8, (budget // bytes_per_row) // 8 * 8)

    if rows <= 8:
        # Tiny volume: one full-extent (rows, 128) tile per batch element.
        return rows * _LANE, rows, rows, 1

    rows_pad = pl.cdiv(rows, 8) * 8            # sublane-dense row count
    tile = max(8, (min(max_tile, rows_pad) // 8) * 8)

    # Ensure at least 2 total grid steps (megacore + pipeline overlap).
    while B * pl.cdiv(rows_pad, tile) < 2 and tile > 8:
        tile = max(8, ((tile // 2) // 8) * 8)

    # Prefer a tile that divides rows_pad exactly (no extra row padding).
    t = tile
    while t > 8 and rows_pad % t != 0:
        t -= 8
    if rows_pad % t == 0:
        tile = t

    rows_pad = pl.cdiv(rows_pad, tile) * tile
    n_tiles = rows_pad // tile
    return rows_pad * _LANE, rows_pad, tile, n_tiles


def iadb_target(image, masks, key):
    """JAX/Pallas equivalent of IADBTarget.forward (stateless; RNG via `key`)."""
    B, C, X, Y, Z = image.shape
    S = X * Y * Z

    k_noise, k_alpha = jax.random.split(key)
    alpha = jax.random.uniform(k_alpha, (B,), dtype=jnp.float32)
    noise = jax.random.normal(k_noise, (B, C, X, Y, Z), dtype=jnp.float32)

    s_pad, rows_pad, r_tile, n_tiles = _plan_tiling(S, C, B)

    img_flat = image.astype(jnp.float32).reshape(B, C, S)
    nz_flat = noise.reshape(B, C, S)
    if s_pad != S:
        # Only for truly ragged volumes (S not a multiple of 128).
        pad = ((0, 0), (0, 0), (0, s_pad - S))
        img_flat = jnp.pad(img_flat, pad)
        nz_flat = jnp.pad(nz_flat, pad)
    img4 = img_flat.reshape(B, C, rows_pad, _LANE)
    nz4 = nz_flat.reshape(B, C, rows_pad, _LANE)

    out4 = pl.pallas_call(
        _iadb_kernel,
        out_shape=jax.ShapeDtypeStruct((B, C + 1, rows_pad, _LANE), jnp.float32),
        grid_spec=pltpu.PrefetchScalarGridSpec(
            num_scalar_prefetch=1,                 # alpha -> SMEM
            grid=(B, n_tiles),
            in_specs=[
                pl.BlockSpec((None, C, r_tile, _LANE),
                             lambda b, s, alpha_ref: (b, 0, s, 0)),
                pl.BlockSpec((None, C, r_tile, _LANE),
                             lambda b, s, alpha_ref: (b, 0, s, 0)),
            ],
            out_specs=pl.BlockSpec((None, C + 1, r_tile, _LANE),
                                   lambda b, s, alpha_ref: (b, 0, s, 0)),
        ),
        compiler_params=pltpu.CompilerParams(
            dimension_semantics=("parallel", "parallel"),
            vmem_limit_bytes=32 * 1024 * 1024,
        ),
    )(alpha, img4, nz4)

    out_flat = out4.reshape(B, C + 1, rows_pad * _LANE)
    if s_pad != S:
        out_flat = out_flat[:, :, :S]
    out = out_flat.reshape(B, C + 1, X, Y, Z)

    # masks.to(dtype) is a plain dtype cast -> glue in the wrapper.
    # TODO(synk): torch channels_last_3d memory format has no Pallas/JAX
    # analogue; standard contiguous layout is kept.
    return out, noise, masks.astype(jnp.float32)


if __name__ == "__main__":
    key = jax.random.PRNGKey(0)
    k_img, k_mask, k_fwd = jax.random.split(key, 3)

    B, C, X, Y, Z = 2, 4, 8, 8, 8
    image = jax.random.normal(k_img, (B, C, X, Y, Z), dtype=jnp.float32)
    masks = (jax.random.uniform(k_mask, (B, 1, X, Y, Z)) > 0.5).astype(jnp.int32)

    out, noise, masks_f = iadb_target(image, masks, k_fwd)
    jax.block_until_ready((out, noise, masks_f))

    # Reference: re-derive alpha/noise exactly as the wrapper does.
    k_noise, k_alpha = jax.random.split(k_fwd)
    ref_alpha = jax.random.uniform(k_alpha, (B,), dtype=jnp.float32)
    ref_noise = jax.random.normal(k_noise, image.shape, dtype=jnp.float32)
    a_b = ref_alpha[:, None, None, None, None]
    ref_blend = ref_noise * (1.0 - a_b) + image * a_b

    assert out.shape == (B, C + 1, X, Y, Z)
    assert noise.shape == image.shape
    assert masks_f.dtype == jnp.float32
    assert jnp.allclose(noise, ref_noise), "returned noise != key-derived noise"
    assert jnp.allclose(out[:, :C], ref_blend, atol=1e-5), float(
        jnp.max(jnp.abs(out[:, :C] - ref_blend)))
    assert jnp.allclose(out[:, C],
                        jnp.broadcast_to(a_b[:, 0], (B, X, Y, Z)), atol=1e-6)

    print("KERNEL_OK")
</pallas_src>

<mosaic_0001>
module attributes {stable_mosaic.version = 11 : i64} {
  func.func @_iadb_kernel(%arg0: i32, %arg1: i32, %arg2: memref<2xf32, #tpu.memory_space<smem>>, %arg3: memref<1x4x4x128xf32, #tpu.memory_space<vmem>>, %arg4: memref<1x4x4x128xf32, #tpu.memory_space<vmem>>, %arg5: memref<1x5x4x128xf32, #tpu.memory_space<vmem>>) attributes {dimension_semantics = [#tpu.dimension_semantics<parallel>, #tpu.dimension_semantics<parallel>], iteration_bounds = array<i64: 2, 1>, scalar_prefetch = 1 : i64, scratch_operands = 0 : i64, tpu.core_type = #tpu.core_type<tc>, window_params = [{transform_indices = @transform_0, window_bounds = array<i64: 1, 4, 4, 128>}, {transform_indices = @transform_1, window_bounds = array<i64: 1, 4, 4, 128>}, {transform_indices = @transform_2, window_bounds = array<i64: 1, 5, 4, 128>}]} {
    %0 = arith.index_cast %arg0 : i32 to index
    %1 = memref.load %arg2[%0] : memref<2xf32, #tpu.memory_space<smem>>
    %cst = arith.constant 1.000000e+00 : f32
    %2 = arith.subf %cst, %1 : f32
    %c0 = arith.constant 0 : index
    %c0_0 = arith.constant 0 : index
    %c0_1 = arith.constant 0 : index
    %c0_2 = arith.constant 0 : index
    %3 = vector.load %arg4[%c0, %c0_0, %c0_1, %c0_2] : memref<1x4x4x128xf32, #tpu.memory_space<vmem>>, vector<1x4x4x128xf32>
    %4 = vector.shape_cast %3 : vector<1x4x4x128xf32> to vector<4x4x128xf32>
    %5 = vector.broadcast %2 : f32 to vector<4x4x128xf32>
    %6 = arith.mulf %4, %5 : vector<4x4x128xf32>
    %c0_3 = arith.constant 0 : index
    %c0_4 = arith.constant 0 : index
    %c0_5 = arith.constant 0 : index
    %c0_6 = arith.constant 0 : index
    %7 = vector.load %arg3[%c0_3, %c0_4, %c0_5, %c0_6] : memref<1x4x4x128xf32, #tpu.memory_space<vmem>>, vector<1x4x4x128xf32>
    %8 = vector.shape_cast %7 : vector<1x4x4x128xf32> to vector<4x4x128xf32>
    %9 = vector.broadcast %1 : f32 to vector<4x4x128xf32>
    %10 = arith.mulf %8, %9 : vector<4x4x128xf32>
    %11 = arith.addf %6, %10 : vector<4x4x128xf32>
    %c0_7 = arith.constant 0 : index
    %c0_8 = arith.constant 0 : index
    %c0_9 = arith.constant 0 : index
    %c0_10 = arith.constant 0 : index
    %12 = vector.load %arg5[%c0_7, %c0_8, %c0_9, %c0_10] : memref<1x5x4x128xf32, #tpu.memory_space<vmem>>, vector<1x4x4x128xf32>
    %13 = vector.shape_cast %12 : vector<1x4x4x128xf32> to vector<4x4x128xf32>
    %14 = vector.shape_cast %11 : vector<4x4x128xf32> to vector<1x4x4x128xf32>
    tpu.vector_store %arg5[%c0_7, %c0_8, %c0_9, %c0_10], %14 {strides = array<i32>} : memref<1x5x4x128xf32, #tpu.memory_space<vmem>>, vector<1x4x4x128xf32>,
    %15 = vector.broadcast %1 : f32 to vector<4x128xf32>
    %c0_11 = arith.constant 0 : index
    %c4 = arith.constant 4 : index
    %c0_12 = arith.constant 0 : index
    %c0_13 = arith.constant 0 : index
    %16 = vector.load %arg5[%c0_11, %c4, %c0_12, %c0_13] : memref<1x5x4x128xf32, #tpu.memory_space<vmem>>, vector<1x1x4x128xf32>
    %17 = vector.shape_cast %16 : vector<1x1x4x128xf32> to vector<4x128xf32>
    %18 = vector.shape_cast %15 : vector<4x128xf32> to vector<1x1x4x128xf32>
    tpu.vector_store %arg5[%c0_11, %c4, %c0_12, %c0_13], %18 {strides = array<i32>} : memref<1x5x4x128xf32, #tpu.memory_space<vmem>>, vector<1x1x4x128xf32>,
    return
  }
  func.func @transform_0(%arg0: i32, %arg1: i32, %arg2: memref<2xf32, #tpu.memory_space<smem>>) -> (i32, i32, i32, i32) {
    %c0_i32 = arith.constant 0 : i32
    %c0_i32_0 = arith.constant 0 : i32
    %c0_i32_1 = arith.constant 0 : i32
    return %arg0, %c0_i32, %arg1, %c0_i32_0 : i32, i32, i32, i32
  }
  func.func @transform_1(%arg0: i32, %arg1: i32, %arg2: memref<2xf32, #tpu.memory_space<smem>>) -> (i32, i32, i32, i32) {
    %c0_i32 = arith.constant 0 : i32
    %c0_i32_0 = arith.constant 0 : i32
    %c0_i32_1 = arith.constant 0 : i32
    return %arg0, %c0_i32, %arg1, %c0_i32_0 : i32, i32, i32, i32
  }
  func.func @transform_2(%arg0: i32, %arg1: i32, %arg2: memref<2xf32, #tpu.memory_space<smem>>) -> (i32, i32, i32, i32) {
    %c0_i32 = arith.constant 0 : i32
    %c0_i32_0 = arith.constant 0 : i32
    %c0_i32_1 = arith.constant 0 : i32
    return %arg0, %c0_i32, %arg1, %c0_i32_0 : i32, i32, i32, i32
  }
}

</mosaic_0001>

<llo_original>
// kernel: tpu_custom_call.1
$region0: #{tpu_custom_call.1}
  #allocation0 [shape = 'u32[]', space=smem, size = 0x4, offset = 0x4, fixed_abs, tag = 'smem constant byte address 0x4 - core index']
  #allocation1 [shape = 'u32[144,128]{1,0:T(1,128)}', space=vmem, size = 0x12000, scoped, tag = 'internal scratch']
  #allocation2 [shape = 's32[1]{0}', space=sflag, size = 0x4, scoped, tag = 'scoped memory for tpu_custom_call.1']
  #allocation3 [shape = 'u8[512]{0}', space=smem, size = 0x200, scoped, tag = 'prefetched SMEM operand 0']
  %s0 = inlined_call_operand.hbm [shape: f32[2], index: 0, kind: input, shape index: {}]
  %s1 = inlined_call_operand.hbm [shape: f32[2,4,4,128], index: 1, kind: input, shape index: {}]
  %s2 = inlined_call_operand.hbm [shape: f32[2,4,4,128], index: 2, kind: input, shape index: {}]
  %s3 = inlined_call_operand.hbm [shape: f32[2,5,4,128], index: 3, kind: output, shape index: {}]
  %s4 = sld [smem:[#allocation0]]
  $region49: #{tpu_custom_call.1} parent=0
    _
  %s6 = ssub.s32 1, %s4
  %s7 = scalar_select 0, %s6, %s4
  %9 = dma.hbm_to_smem %s0, 16, [#allocation3], [#allocation2]
  %10 = dma.done [#allocation2], 16
  %11 = sfence
  $region1: #{tpu_custom_call.1} parent=0
    #allocation4 [shape = 'u8[16384]{0}', space=vmem, size = 0x4000, scoped, tag = 'input window, operand 1']
    #allocation5 [shape = 's32[2]{0}', space=sflag, size = 0x8, scoped, tag = 'scoped memory for tpu_custom_call.1']
    #allocation6 [shape = 's32[2]{0}', space=sflag, size = 0x8, scoped, tag = 'scoped memory for tpu_custom_call.1']
    #allocation7 [shape = 'u8[16384]{0}', space=vmem, size = 0x4000, scoped, tag = 'input window, operand 2']
    #allocation8 [shape = 's32[2]{0}', space=sflag, size = 0x8, scoped, tag = 'scoped memory for tpu_custom_call.1']
    #allocation9 [shape = 'u8[20480]{0}', space=vmem, size = 0x5000, scoped, tag = 'output window, operand 0']
    %12 = vsyncpa [#allocation5], 0
    %s13 = scalar_lea.sflag [#allocation5], 1
    %14 = vsyncpa %s13, 0
    %15 = vsyncpa [#allocation8], 0
    %s16 = scalar_lea.sflag [#allocation8], 1
    %17 = vsyncpa %s16, 0
    %18 = vsyncpa [#allocation6], 0
    %s19 = scalar_lea.sflag [#allocation6], 1
    %20 = vsyncpa %s19, 0
    loop: start=0, step=1, limit=4
    $region2: #{tpu_custom_call.1} parent=1 // loop_pre_header
      _
    $region3: #{tpu_custom_call.1} parent=1 // loop_header
      %s22 = sphi 0, %s26
      %p23 = scmp.ge.s32.totalorder %s22, 4
      %s29 = sphi 0, %s41
      %s30 = sphi 0, %s37
      %s31 = sphi 0, %s29
      %s32 = sphi 0, %s30
      %s33 = sphi 0, %s31
      %s34 = sphi 0, %s32
      %s46 = sphi 0, %s48
      %s49 = sphi 0, %s46
      %s50 = sphi 0, %s49
      %s66 = sphi 0, %s50
      %s74 = sphi 0, %s76
      %s77 = sphi 0, %s74
      %s78 = sphi 0, %s77
      %s94 = sphi 0, %s78
      %s102 = sphi 0, %s104
      %s105 = sphi 0, %s102
      %s106 = sphi 0, %s105
      %s122 = sphi 0, %s106
    $region4: #{tpu_custom_call.1} parent=1 // loop_header_branch
      %25 = sbr.rel (%p23) target = $region8
    $region5: #{tpu_custom_call.1} parent=1 // loop_body
      %s27 = ssub.s32 %s22, 1
      %s28 = ssub.s32 %s22, 2
      %s35 = sadd.s32 1, %s30
      %p36 = scmp.ge.s32.totalorder %s35, 1
      %s37 = scalar_select %p36, 0, %s35
      %s38 = sadd.s32 1, %s29
      %s39 = scalar_select %p36, %s38, %s29
      %p40 = scmp.ge.s32.totalorder %s39, 2
      %s41 = scalar_select %p40, 0, %s39
      %s42 = ssub.s32 %s29, %s41
      %s43 = ssub.s32 %s30, %s37
      %s44 = sor.u32 %s42, %s43
      %p45 = scmp.eq.s32.totalorder %s44, 0
      %s47 = sadd.s32 %s46, 1
      %s48 = scalar_select %p45, %s46, %s47
      %p51 = pneg %p45
      %p52 = scmp.eq.s32.totalorder %s22, 1
      %p53 = por %p51, %p52
      %p54 = scmp.ne.s32.totalorder %s46, %s49
      %p55 = scmp.eq.s32.totalorder %s22, 0
      %p56 = por %p54, %p55
      %p57 = scmp.ne.s32.totalorder %s46, %s49
      %p58 = scmp.eq.s32.totalorder %s27, 1
      %p59 = por %p57, %p58
      %p60 = scmp.ne.s32.totalorder %s49, %s50
      %p61 = scmp.eq.s32.totalorder %s27, 0
      %p62 = por %p60, %p61
      %p63 = scmp.ne.s32.totalorder %s49, %s50
      %p64 = scmp.eq.s32.totalorder %s28, 1
      %p65 = por %p63, %p64
      %p67 = scmp.ne.s32.totalorder %s50, %s66
      %p68 = scmp.eq.s32.totalorder %s28, 0
      %p69 = por %p67, %p68
      %s70 = ssub.s32 %s29, %s41
      %s71 = ssub.s32 %s30, %s37
      %s72 = sor.u32 %s70, %s71
      %p73 = scmp.eq.s32.totalorder %s72, 0
      %s75 = sadd.s32 %s74, 1
      %s76 = scalar_select %p73, %s74, %s75
      %p79 = pneg %p73
      %p80 = scmp.eq.s32.totalorder %s22, 1
      %p81 = por %p79, %p80
      %p82 = scmp.ne.s32.totalorder %s74, %s77
      %p83 = scmp.eq.s32.totalorder %s22, 0
      %p84 = por %p82, %p83
      %p85 = scmp.ne.s32.totalorder %s74, %s77
      %p86 = scmp.eq.s32.totalorder %s27, 1
      %p87 = por %p85, %p86
      %p88 = scmp.ne.s32.totalorder %s77, %s78
      %p89 = scmp.eq.s32.totalorder %s27, 0
      %p90 = por %p88, %p89
      %p91 = scmp.ne.s32.totalorder %s77, %s78
      %p92 = scmp.eq.s32.totalorder %s28, 1
      %p93 = por %p91, %p92
      %p95 = scmp.ne.s32.totalorder %s78, %s94
      %p96 = scmp.eq.s32.totalorder %s28, 0
      %p97 = por %p95, %p96
      %s98 = ssub.s32 %s29, %s41
      %s99 = ssub.s32 %s30, %s37
      %s100 = sor.u32 %s98, %s99
      %p101 = scmp.eq.s32.totalorder %s100, 0
      %s103 = sadd.s32 %s102, 1
      %s104 = scalar_select %p101, %s102, %s103
      %p107 = pneg %p101
      %p108 = scmp.eq.s32.totalorder %s22, 1
      %p109 = por %p107, %p108
      %p110 = scmp.ne.s32.totalorder %s102, %s105
      %p111 = scmp.eq.s32.totalorder %s22, 0
      %p112 = por %p110, %p111
      %p113 = scmp.ne.s32.totalorder %s102, %s105
      %p114 = scmp.eq.s32.totalorder %s27, 1
      %p115 = por %p113, %p114
      %p116 = scmp.ne.s32.totalorder %s105, %s106
      %p117 = scmp.eq.s32.totalorder %s27, 0
      %p118 = por %p116, %p117
      %p119 = scmp.ne.s32.totalorder %s105, %s106
      %p120 = scmp.eq.s32.totalorder %s28, 1
      %p121 = por %p119, %p120
      %p123 = scmp.ne.s32.totalorder %s106, %s122
      %p124 = scmp.eq.s32.totalorder %s28, 0
      %p125 = por %p123, %p124
      %p126 = scmp.le.s32.totalorder 1, %s22
      %p127 = scmp.lt.s32.totalorder %s22, 3
      %p128 = pnand %p126, %p127
      %p129 = pneg %p128
      // Predicated region
      $region9: #{tpu_custom_call.1} parent=5 // pred_check
        _
      $region10: #{tpu_custom_call.1} parent=5 // pred_check_branch
        %131 = sbr.rel (%p128) target = $region12
      $region11: #{tpu_custom_call.1} parent=5 // pred_region
        %s132 = ssub.s32 %s22, 1
      $region12: #{tpu_custom_call.1} parent=5 // pred_fallthru
        _
      %p133 = scmp.lt.s32.totalorder %s22, 2
      // Predicated region
      $region13: #{tpu_custom_call.1} parent=5 // pred_check
        %p134 = pneg %p133
      $region14: #{tpu_custom_call.1} parent=5 // pred_check_branch
        %136 = sbr.rel (%p134) target = $region16
      $region15: #{tpu_custom_call.1} parent=5 // pred_region
        // Predicated region
        $region17: #{tpu_custom_call.1} parent=15 // pred_check
          %p137 = pneg %p56
        $region18: #{tpu_custom_call.1} parent=15 // pred_check_branch
          %139 = sbr.rel (%p137) target = $region20
        $region19: #{tpu_custom_call.1} parent=15 // pred_region
          %s140 = sand.u32 %s46, 1
          %s141 = scalar_lea.sflag [#allocation5], %s140
          %s142 = sand.u32 %s46, 1
          %s143 = smul.addr %s142, 16
          %s144 = scalar_lea.vmem [#allocation4], %s143
          %s146 = ssub.s32 256, 256
          %147 = vsyncadd %s141, %s146
          %s148 = smul.addr %s29, 4
          %s149 = sadd.s32 %s30, %s148
          %s150 = smul.addr %s149, 64
          %s151 = scalar_lea.hbm %s1, %s150
          %s152 = sshll.u32 %s144, 4
          %s153 = int_to_ptr.vmem [resolvable:$true] %s152
          %158 = dma.hbm_to_vmem [thread:$0]  %s151, 256, %s153, %s141, 64, 64, 4
        $region20: #{tpu_custom_call.1} parent=15 // pred_fallthru
          _
        // Predicated region
        $region21: #{tpu_custom_call.1} parent=15 // pred_check
          %p159 = pneg %p84
        $region22: #{tpu_custom_call.1} parent=15 // pred_check_branch
          %161 = sbr.rel (%p159) target = $region24
        $region23: #{tpu_custom_call.1} parent=15 // pred_region
          %s162 = sand.u32 %s74, 1
          %s163 = scalar_lea.sflag [#allocation8], %s162
          %s164 = sand.u32 %s74, 1
          %s165 = smul.addr %s164, 16
          %s166 = scalar_lea.vmem [#allocation7], %s165
          %s168 = ssub.s32 256, 256
          %169 = vsyncadd %s163, %s168
          %s170 = smul.addr %s29, 4
          %s171 = sadd.s32 %s30, %s170
          %s172 = smul.addr %s171, 64
          %s173 = scalar_lea.hbm %s2, %s172
          %s174 = sshll.u32 %s166, 4
          %s175 = int_to_ptr.vmem [resolvable:$true] %s174
          %180 = dma.hbm_to_vmem [thread:$0]  %s173, 256, %s175, %s163, 64, 64, 4
        $region24: #{tpu_custom_call.1} parent=15 // pred_fallthru
          _
      $region16: #{tpu_custom_call.1} parent=5 // pred_fallthru
        _
      %p181 = scmp.le.s32.totalorder 1, %s22
      %p182 = scmp.lt.s32.totalorder %s22, 3
      %p183 = pnand %p181, %p182
      %p184 = pneg %p183
      // Predicated region
      $region25: #{tpu_custom_call.1} parent=5 // pred_check
        _
      $region26: #{tpu_custom_call.1} parent=5 // pred_check_branch
        %186 = sbr.rel (%p183) target = $region28
      $region27: #{tpu_custom_call.1} parent=5 // pred_region
        %s187 = ssub.s32 %s22, 1
        %s188 = sand.u32 %s49, 1
        %s189 = scalar_lea.sflag [#allocation5], %s188
        %s190 = sand.u32 %s49, 1
        %s191 = smul.addr %s190, 16
        %s192 = scalar_lea.vmem [#allocation4], %s191
        // Predicated region
        $region29: #{tpu_custom_call.1} parent=27 // pred_check
          %p193 = pneg %p62
        $region30: #{tpu_custom_call.1} parent=27 // pred_check_branch
          %195 = sbr.rel (%p193) target = $region32
        $region31: #{tpu_custom_call.1} parent=27 // pred_region
          %196 = dma.done %s189, 256
        $region32: #{tpu_custom_call.1} parent=27 // pred_fallthru
          _
        %s197 = sand.u32 %s77, 1
        %s198 = scalar_lea.sflag [#allocation8], %s197
        %s199 = sand.u32 %s77, 1
        %s200 = smul.addr %s199, 16
        %s201 = scalar_lea.vmem [#allocation7], %s200
        // Predicated region
        $region33: #{tpu_custom_call.1} parent=27 // pred_check
          %p202 = pneg %p90
        $region34: #{tpu_custom_call.1} parent=27 // pred_check_branch
          %204 = sbr.rel (%p202) target = $region36
        $region35: #{tpu_custom_call.1} parent=27 // pred_region
          %205 = dma.done %s198, 256
        $region36: #{tpu_custom_call.1} parent=27 // pred_fallthru
          _
        %s206 = sand.u32 %s49, 1
        %s207 = scalar_lea.sflag [#allocation5], %s206
        %s208 = sand.u32 %s49, 1
        %s209 = smul.addr %s208, 16
        %s210 = scalar_lea.vmem [#allocation4], %s209
        %p211 = pneg %p62
        %p212 = pneg %p59
        %s213 = sand.u32 %s77, 1
        %s214 = scalar_lea.sflag [#allocation8], %s213
        %s215 = sand.u32 %s77, 1
        %s216 = smul.addr %s215, 16
        %s217 = scalar_lea.vmem [#allocation7], %s216
        %p218 = pneg %p90
        %p219 = pneg %p87
        %p220 = pneg %p118
        %p221 = pneg %p115
        %s222 = sand.u32 %s105, 1
        %s223 = scalar_lea.sflag [#allocation6], %s222
        %s224 = sand.u32 %s105, 1
        %s225 = smul.addr %s224, 20
        %s226 = scalar_lea.vmem [#allocation9], %s225
        %s227 = sld [smem:[#allocation3 + %s31]]
        %s228 = ssub.f32 1.0, %s227
        %v229 = vld [vmem:[%s201] sm:$0xf]
        %v230 = vld [vmem:[%s201 + $0x4] sm:$0xf]
        %v231 = vld [vmem:[%s201 + $0x8] sm:$0xf]
        %v232 = vld [vmem:[%s201 + $0xc] sm:$0xf]
        %v233 = vstv %s228
        %v234 = vmul.f32 %v229, %v233
        %v235 = vmul.f32 %v230, %v233
        %v236 = vmul.f32 %v231, %v233
        %v237 = vmul.f32 %v232, %v233
        %v238 = vld [vmem:[%s192] sm:$0xf]
        %v239 = vld [vmem:[%s192 + $0x4] sm:$0xf]
        %v240 = vld [vmem:[%s192 + $0x8] sm:$0xf]
        %v241 = vld [vmem:[%s192 + $0xc] sm:$0xf]
        %v242 = vstv %s227
        %v243 = vmul.f32 %v238, %v242
        %v244 = vmul.f32 %v239, %v242
        %v245 = vmul.f32 %v240, %v242
        %v246 = vmul.f32 %v241, %v242
        %v247 = vadd.f32 %v234, %v243
        %v248 = vadd.f32 %v235, %v244
        %v249 = vadd.f32 %v236, %v245
        %v250 = vadd.f32 %v237, %v246
        %251 = vst [vmem:[%s226] sm:$0xf] %v247
        %252 = vst [vmem:[%s226 + $0x4] sm:$0xf] %v248
        %253 = vst [vmem:[%s226 + $0x8] sm:$0xf] %v249
        %254 = vst [vmem:[%s226 + $0xc] sm:$0xf] %v250
        %s255 = scalar_lea.vmem %s226, 16 [#allocation9]
        %256 = vst [vmem:[%s255] sm:$0xf] %v242
        %s257 = sand.u32 %s105, 1
        %s258 = scalar_lea.sflag [#allocation6], %s257
        %s259 = sand.u32 %s105, 1
        %s260 = smul.addr %s259, 20
        %s261 = scalar_lea.vmem [#allocation9], %s260
        // Predicated region
        $region37: #{tpu_custom_call.1} parent=27 // pred_check
          %p262 = pneg %p115
        $region38: #{tpu_custom_call.1} parent=27 // pred_check_branch
          %264 = sbr.rel (%p262) target = $region40
        $region39: #{tpu_custom_call.1} parent=27 // pred_region
          %s266 = ssub.s32 320, 320
          %267 = vsyncadd %s258, %s266
          %s268 = smul.addr %s31, 5
          %s269 = sadd.s32 %s32, %s268
          %s270 = smul.addr %s269, 64
          %s271 = scalar_lea.hbm %s3, %s270
          %s272 = sshll.u32 %s261, 4
          %s273 = int_to_ptr.vmem [resolvable:$true] %s272
          %278 = dma.vmem_to_hbm [thread:$0]  %s273, 320, %s271, %s258, 64, 64, 4
        $region40: #{tpu_custom_call.1} parent=27 // pred_fallthru
          _
      $region28: #{tpu_custom_call.1} parent=5 // pred_fallthru
        _
      %p279 = scmp.le.s32.totalorder 2, %s22
      // Predicated region
      $region41: #{tpu_custom_call.1} parent=5 // pred_check
        %p280 = pneg %p279
      $region42: #{tpu_custom_call.1} parent=5 // pred_check_branch
        %282 = sbr.rel (%p280) target = $region44
      $region43: #{tpu_custom_call.1} parent=5 // pred_region
        %s283 = ssub.s32 %s22, 2
        // Predicated region
        $region45: #{tpu_custom_call.1} parent=43 // pred_check
          %p284 = pneg %p121
        $region46: #{tpu_custom_call.1} parent=43 // pred_check_branch
          %286 = sbr.rel (%p284) target = $region48
        $region47: #{tpu_custom_call.1} parent=43 // pred_region
          %s287 = sand.u32 %s106, 1
          %s288 = scalar_lea.sflag [#allocation6], %s287
          %s289 = sand.u32 %s106, 1
          %s290 = smul.addr %s289, 20
          %s291 = scalar_lea.vmem [#allocation9], %s290
          %292 = dma.done %s288, 320
        $region48: #{tpu_custom_call.1} parent=43 // pred_fallthru
          _
      $region44: #{tpu_custom_call.1} parent=5 // pred_fallthru
        _
    $region6: #{tpu_custom_call.1} parent=1 // loop_footer
      %s26 = sadd.s32 1, %s22
    $region7: #{tpu_custom_call.1} parent=1 // loop_footer_branch
      %21 = sbr.rel target = $region3
    $region8: #{tpu_custom_call.1} parent=1 // loop_exit
      _
    %293 = vsyncpa [#allocation5], 1
    %s294 = scalar_lea.sflag [#allocation5], 1
    %295 = vsyncpa %s294, 1
    %296 = vsyncpa [#allocation8], 1
    %s297 = scalar_lea.sflag [#allocation8], 1
    %298 = vsyncpa %s297, 1
    %299 = vsyncpa [#allocation6], 1
    %s300 = scalar_lea.sflag [#allocation6], 1
    %301 = vsyncpa %s300, 1

</llo_original>
